<compile_context>
chip_gen: v6e
topology: v6e:2x2x1
jax: 0.10.0
libtpu: 0.0.40
codegen_flags: <defaults>
</compile_context>

<pallas_src>
import math

import jax
import jax.numpy as jnp
from jax import lax
from jax.experimental import pallas as pl
from jax.experimental.pallas import tpu as pltpu


VMEM_LIMIT = 48 * 1024 * 1024  # leaves headroom under v7x's 64 MiB physical VMEM


# ----------------------------------------------------------------------------- helpers


def _pick_tile(dim, pref):
    """Largest multiple-of-128 divisor of `dim` that is <= pref; else the full dim."""
    if dim <= pref:
        return dim
    t = (pref // 128) * 128
    while t >= 128:
        if dim % t == 0:
            return t
        t -= 128
    return dim


def _cparams(*sems):
    return pltpu.CompilerParams(dimension_semantics=sems,
                                vmem_limit_bytes=VMEM_LIMIT)


# ----------------------------------------------------------------------------- kernels


def _ln_kernel(eps: float):
    """out = LayerNorm(x) * gamma + beta over the last axis (no residual read)."""

    def kernel(x_ref, g_ref, b_ref, o_ref):
        x = x_ref[0].astype(jnp.float32)                  # (ts, H)
        mu = jnp.mean(x, axis=-1, keepdims=True)
        xc = x - mu
        var = jnp.mean(xc * xc, axis=-1, keepdims=True)
        y = xc * lax.rsqrt(var + eps)
        o_ref[0] = (y * g_ref[...] + b_ref[...]).astype(o_ref.dtype)

    return kernel


def _dense_kernel(act: str):
    """y = x @ W + b (+ optional activation). bf16 MXU matmul, f32 accumulate."""

    def kernel(x_ref, w_ref, b_ref, o_ref):
        x = x_ref[0].astype(jnp.bfloat16)                 # (ts, K)
        w = w_ref[...]                                    # (K, tn) bf16
        y = jnp.dot(x, w, preferred_element_type=jnp.float32) + b_ref[...]
        if act == "gelu":                                 # exact (erf) GELU as in BERT
            y = 0.5 * y * (1.0 + lax.erf(y * 0.7071067811865476))
        elif act == "tanh":
            y = jnp.tanh(y)
        o_ref[0] = y.astype(o_ref.dtype)

    return kernel


def _dense_addln_kernel(eps: float):
    """out = LayerNorm((x @ W + b) + residual) * gamma + beta (fused epilogue)."""

    def kernel(x_ref, r_ref, w_ref, b_ref, g_ref, bb_ref, o_ref):
        x = x_ref[0].astype(jnp.bfloat16)                 # (ts, K)
        y = jnp.dot(x, w_ref[...], preferred_element_type=jnp.float32)
        y = y + b_ref[...] + r_ref[0].astype(jnp.float32)
        mu = jnp.mean(y, axis=-1, keepdims=True)
        yc = y - mu
        var = jnp.mean(yc * yc, axis=-1, keepdims=True)
        z = yc * lax.rsqrt(var + eps)
        o_ref[0] = (z * g_ref[...] + bb_ref[...]).astype(o_ref.dtype)

    return kernel


def _ffn_kernel(eps: float):
    """Fused BERT FFN: out = LayerNorm(gelu(x @ wi + bi) @ wf + bf + x).

    The `inter` dimension is the last grid axis (marked "arbitrary"); a f32 (ts, H)
    accumulator lives in VMEM scratch, so the (B, S, inter) intermediate never touches
    HBM.  x doubles as the residual (read once)."""

    def kernel(x_ref, wi_ref, bi_ref, wf_ref, bf_ref, g_ref, bb_ref, o_ref, acc_ref):
        j = pl.program_id(2)

        @pl.when(j == 0)
        def _():
            acc_ref[...] = jnp.zeros_like(acc_ref)

        x = x_ref[0].astype(jnp.bfloat16)                 # (ts, H)
        h = jnp.dot(x, wi_ref[...], preferred_element_type=jnp.float32) + bi_ref[...]
        h = 0.5 * h * (1.0 + lax.erf(h * 0.7071067811865476))   # exact erf GELU
        acc_ref[...] += jnp.dot(h.astype(jnp.bfloat16), wf_ref[...],
                                preferred_element_type=jnp.float32)

        @pl.when(j == pl.num_programs(2) - 1)
        def _():
            y = acc_ref[...] + bf_ref[...] + x_ref[0].astype(jnp.float32)
            mu = jnp.mean(y, axis=-1, keepdims=True)
            yc = y - mu
            var = jnp.mean(yc * yc, axis=-1, keepdims=True)
            z = yc * lax.rsqrt(var + eps)
            o_ref[0] = (z * g_ref[...] + bb_ref[...]).astype(o_ref.dtype)

    return kernel


def _attn_core(q_all, k_all, v_all, m, hg, dH, return_probs, out_refs):
    """Shared per-head attention math.  q_all already carries the 1/sqrt(dH) scale."""
    ctx_ref = out_refs[0]
    ctx_parts = []
    for hi in range(hg):                                  # static unroll over heads
        lo, hi_c = hi * dH, (hi + 1) * dH
        q = q_all[:, lo:hi_c]                             # (S, dH) bf16
        k = k_all[:, lo:hi_c]
        v = v_all[:, lo:hi_c]
        # contract on the dH axis of both (q . k^T) without materializing k.T
        s = lax.dot_general(q, k, (((1,), (1,)), ((), ())),
                            preferred_element_type=jnp.float32)       # (S, S) f32
        s = s + m                                          # additive mask (1, S)
        s = s - jnp.max(s, axis=-1, keepdims=True)
        e = jnp.exp(s)
        denom = jnp.sum(e, axis=-1, keepdims=True)
        if return_probs:
            p = e / denom                                  # exact: probs are returned
        else:
            p = e * pl.reciprocal(denom, approx=True)      # EUP divide
        ctx = jnp.dot(p.astype(jnp.bfloat16), v, preferred_element_type=jnp.float32)
        ctx_parts.append(ctx.astype(ctx_ref.dtype))
        if return_probs:
            out_refs[1][0, hi] = p.astype(out_refs[1].dtype)
    if hg == 1:
        ctx_ref[0] = ctx_parts[0]
    else:
        ctx_ref[0] = jnp.concatenate(ctx_parts, axis=-1)   # single lane-dense store


def _attn_kernel_grouped(scale: float, hg: int, dH: int, return_probs: bool):
    """Head-group attention: q/k/v arrive as 128-lane wide slices of the QKV tensor."""

    def kernel(q_ref, k_ref, v_ref, m_ref, *out_refs):
        m = m_ref[0]                                       # (1, S) f32
        q_all = (q_ref[0].astype(jnp.float32) * scale).astype(jnp.bfloat16)
        _attn_core(q_all, k_ref[0], v_ref[0], m, hg, dH, return_probs, out_refs)

    return kernel


def _attn_kernel_fused(scale: float, nH: int, dH: int, return_probs: bool):
    """Fallback (small / unaligned head dims): one (S, 3H) block, slice q/k/v inside."""
    H = nH * dH

    def kernel(qkv_ref, m_ref, *out_refs):
        m = m_ref[0]                                       # (1, S) f32
        qkv = qkv_ref[0]                                   # (S, 3H) bf16
        q_all = (qkv[:, 0:H].astype(jnp.float32) * scale).astype(jnp.bfloat16)
        k_all = qkv[:, H:2 * H]
        v_all = qkv[:, 2 * H:3 * H]
        _attn_core(q_all, k_all, v_all, m, nH, dH, return_probs, out_refs)

    return kernel


# --------------------------------------------------------------------------- wrappers


def layernorm(x, gamma, beta, eps: float = 1e-12, s_tile: int = 512,
              out_dtype=jnp.bfloat16):
    B, S, H = x.shape
    ts = _pick_tile(S, s_tile)
    return pl.pallas_call(
        _ln_kernel(eps),
        out_shape=jax.ShapeDtypeStruct((B, S, H), out_dtype),
        grid=(B, S // ts),
        in_specs=[
            pl.BlockSpec((1, ts, H), lambda b, i: (b, i, 0)),
            pl.BlockSpec((1, H), lambda b, i: (0, 0)),
            pl.BlockSpec((1, H), lambda b, i: (0, 0)),
        ],
        out_specs=pl.BlockSpec((1, ts, H), lambda b, i: (b, i, 0)),
        compiler_params=_cparams("parallel", "parallel"),
    )(x, gamma.reshape(1, H), beta.reshape(1, H))


def dense(x, w, b, act: str = "none", s_tile: int = 512, n_tile: int = 512,
          out_dtype=jnp.bfloat16):
    """x: (B, S, K); w: (K, N) bf16; b: (N,) f32 -> (B, S, N)."""
    B, S, K = x.shape
    N = w.shape[1]
    ts = _pick_tile(S, s_tile)
    tn = _pick_tile(N, n_tile)
    return pl.pallas_call(
        _dense_kernel(act),
        out_shape=jax.ShapeDtypeStruct((B, S, N), out_dtype),
        grid=(B, S // ts, N // tn),
        in_specs=[
            pl.BlockSpec((1, ts, K), lambda b, i, j: (b, i, 0)),
            pl.BlockSpec((K, tn), lambda b, i, j: (0, j)),
            pl.BlockSpec((1, tn), lambda b, i, j: (0, j)),
        ],
        out_specs=pl.BlockSpec((1, ts, tn), lambda b, i, j: (b, i, j)),
        compiler_params=_cparams("parallel", "parallel", "parallel"),
    )(x, w, b.reshape(1, N))


def dense_add_ln(x, res, w, b, gamma, beta, eps: float = 1e-12, s_tile: int = 512,
                 out_dtype=jnp.bfloat16):
    """LayerNorm((x @ W + b) + res); N is full per block (LN reduces over it)."""
    B, S, K = x.shape
    N = w.shape[1]
    ts = _pick_tile(S, s_tile)
    return pl.pallas_call(
        _dense_addln_kernel(eps),
        out_shape=jax.ShapeDtypeStruct((B, S, N), out_dtype),
        grid=(B, S // ts),
        in_specs=[
            pl.BlockSpec((1, ts, K), lambda b, i: (b, i, 0)),
            pl.BlockSpec((1, ts, N), lambda b, i: (b, i, 0)),
            pl.BlockSpec((K, N), lambda b, i: (0, 0)),
            pl.BlockSpec((1, N), lambda b, i: (0, 0)),
            pl.BlockSpec((1, N), lambda b, i: (0, 0)),
            pl.BlockSpec((1, N), lambda b, i: (0, 0)),
        ],
        out_specs=pl.BlockSpec((1, ts, N), lambda b, i: (b, i, 0)),
        compiler_params=_cparams("parallel", "parallel"),
    )(x, res, w, b.reshape(1, N), gamma.reshape(1, N), beta.reshape(1, N))


def ffn_fused(x, wi, bi, wf, bf, gamma, beta, eps: float = 1e-12,
              s_tile: int = 512, j_tile: int = 512, out_dtype=jnp.bfloat16):
    """Fused FFN: LayerNorm(gelu(x @ wi + bi) @ wf + bf + x). x is also the residual."""
    B, S, H = x.shape
    I = wi.shape[1]
    ts = _pick_tile(S, s_tile)
    tj = _pick_tile(I, j_tile)
    return pl.pallas_call(
        _ffn_kernel(eps),
        out_shape=jax.ShapeDtypeStruct((B, S, H), out_dtype),
        grid=(B, S // ts, I // tj),
        in_specs=[
            pl.BlockSpec((1, ts, H), lambda b, i, j: (b, i, 0)),   # x (+ residual)
            pl.BlockSpec((H, tj), lambda b, i, j: (0, j)),          # wi
            pl.BlockSpec((1, tj), lambda b, i, j: (0, j)),          # bi
            pl.BlockSpec((tj, H), lambda b, i, j: (j, 0)),          # wf
            pl.BlockSpec((1, H), lambda b, i, j: (0, 0)),           # bf
            pl.BlockSpec((1, H), lambda b, i, j: (0, 0)),           # gamma
            pl.BlockSpec((1, H), lambda b, i, j: (0, 0)),           # beta
        ],
        out_specs=pl.BlockSpec((1, ts, H), lambda b, i, j: (b, i, 0)),
        scratch_shapes=[pltpu.VMEM((ts, H), jnp.float32)],
        compiler_params=_cparams("parallel", "parallel", "arbitrary"),
    )(x, wi, bi.reshape(1, I), wf, bf.reshape(1, H),
      gamma.reshape(1, H), beta.reshape(1, H))


def attention(qkv, ext_mask, scale: float, nH: int, dH: int, return_probs: bool):
    """qkv: (B, S, 3H) bf16 laid out [Q heads | K heads | V heads];
    ext_mask: (B, 1, S) additive f32.  Returns (ctx (B,S,H) bf16, probs or None)."""
    B, S, threeH = qkv.shape
    H = nH * dH
    assert threeH == 3 * H

    # pick a head group whose width (hg*dH) is a 128-lane multiple
    hg = None
    for cand in range(1, nH + 1):
        if nH % cand == 0 and (cand * dH) % 128 == 0:
            hg = cand
            break

    out_shape = [jax.ShapeDtypeStruct((B, S, H), jnp.bfloat16)]

    if hg is not None:
        G = nH // hg
        W = hg * dH
        in_specs = [
            pl.BlockSpec((1, S, W), lambda b, g: (b, 0, g)),            # Q group
            pl.BlockSpec((1, S, W), lambda b, g: (b, 0, G + g)),        # K group
            pl.BlockSpec((1, S, W), lambda b, g: (b, 0, 2 * G + g)),    # V group
            pl.BlockSpec((1, 1, S), lambda b, g: (b, 0, 0)),            # mask
        ]
        out_specs = [pl.BlockSpec((1, S, W), lambda b, g: (b, 0, g))]
        if return_probs:
            out_shape.append(jax.ShapeDtypeStruct((B, nH, S, S), jnp.float32))
            out_specs.append(pl.BlockSpec((1, hg, S, S), lambda b, g: (b, g, 0, 0)))
        outs = pl.pallas_call(
            _attn_kernel_grouped(scale, hg, dH, return_probs),
            out_shape=tuple(out_shape),
            grid=(B, G),
            in_specs=in_specs,
            out_specs=tuple(out_specs),
            compiler_params=_cparams("parallel", "parallel"),
        )(qkv, qkv, qkv, ext_mask)
    else:
        # small / unaligned head dim: one full (S, 3H) block per batch element
        in_specs = [
            pl.BlockSpec((1, S, 3 * H), lambda b: (b, 0, 0)),
            pl.BlockSpec((1, 1, S), lambda b: (b, 0, 0)),
        ]
        out_specs = [pl.BlockSpec((1, S, H), lambda b: (b, 0, 0))]
        if return_probs:
            out_shape.append(jax.ShapeDtypeStruct((B, nH, S, S), jnp.float32))
            out_specs.append(pl.BlockSpec((1, nH, S, S), lambda b: (b, 0, 0, 0)))
        outs = pl.pallas_call(
            _attn_kernel_fused(scale, nH, dH, return_probs),
            out_shape=tuple(out_shape),
            grid=(B,),
            in_specs=in_specs,
            out_specs=tuple(out_specs),
            compiler_params=_cparams("parallel"),
        )(qkv, ext_mask)

    ctx = outs[0]
    probs = outs[1] if return_probs else None
    return ctx, probs


# ------------------------------------------------------------------------------ model


def luke_forward(params, word_ids, word_segment_ids, word_attention_mask):
    """LukeModelDoc.forward, path: word_seq_size <= 512, entity_ids is None.

    Returns (word_sequence_output, pooled_output, attention_output) exactly as the
    reference module does on that path (attention_output = last layer attn probs).
    """
    B, S = word_ids.shape
    H = params["word_emb"].shape[1]
    nH = params["num_heads"]
    dH = H // nH

    # ---- BertEmbeddings (gathers are glue; LayerNorm in Pallas; dropout == eval identity)
    pos_ids = jnp.arange(S)
    emb = (
        params["word_emb"][word_ids]
        + params["pos_emb"][pos_ids][None, :, :]
        + params["type_emb"][word_segment_ids]
    )
    x = layernorm(emb, params["emb_ln_g"], params["emb_ln_b"])          # bf16

    # ---- _compute_extended_attention_mask (entity mask is None)
    ext_mask = ((1.0 - word_attention_mask.astype(jnp.float32)) * -10000.0).reshape(
        B, 1, S
    )

    # ---- BertEncoder (output_attentions=True, but only last layer probs are used)
    scale = 1.0 / math.sqrt(dH)
    attn_probs = None
    n_layers = len(params["layers"])
    for li, lp in enumerate(params["layers"]):
        last = li == n_layers - 1

        # fused QKV projection: one HBM read of x, one (H, 3H) bf16 matmul
        qkv = dense(x, lp["w_qkv"], lp["b_qkv"], n_tile=768)            # (B, S, 3H) bf16

        # attention directly on the QKV layout (no transposes); lane-dense ctx store
        ctx, probs = attention(qkv, ext_mask, scale, nH, dH, return_probs=last)
        if probs is not None:
            attn_probs = probs

        # attention output projection fused with residual + LayerNorm
        x = dense_add_ln(ctx, x, lp["wo"], lp["bo"], lp["ln1_g"], lp["ln1_b"])

        # fused FFN (intermediate never round-trips HBM); last layer emits f32
        x = ffn_fused(x, lp["wi"], lp["bi"], lp["wf"], lp["bf"],
                      lp["ln2_g"], lp["ln2_b"],
                      out_dtype=jnp.float32 if last else jnp.bfloat16)

    sequence_output = x                                   # encoder_outputs[0], f32
    attention_output = attn_probs                         # encoder_outputs[-1][-1]

    # ---- BertPooler: dense + tanh on first token
    pooled = dense(
        sequence_output[:, 0:1, :], params["pool_w"], params["pool_b"],
        act="tanh", out_dtype=jnp.float32,
    )[:, 0, :]

    word_sequence_output = sequence_output[:, :S, :]
    return word_sequence_output, pooled, attention_output


# ----------------------------------------------------------------------- param init


def init_params(key, vocab, max_pos, type_vocab, H, nH, inter, L, std=0.02):
    def normal(k, shape, dtype=jnp.float32):
        return (std * jax.random.normal(k, shape, dtype=jnp.float32)).astype(dtype)

    keys = iter(jax.random.split(key, 8 + 10 * L))
    params = {
        "num_heads": nH,
        "word_emb": normal(next(keys), (vocab, H)),
        "pos_emb": normal(next(keys), (max_pos, H)),
        "type_emb": normal(next(keys), (type_vocab, H)),
        "emb_ln_g": jnp.ones((H,), jnp.float32),
        "emb_ln_b": jnp.zeros((H,), jnp.float32),
        "pool_w": normal(next(keys), (H, H), jnp.bfloat16),
        "pool_b": jnp.zeros((H,), jnp.float32),
        "layers": [],
    }
    for _ in range(L):
        wq = normal(next(keys), (H, H), jnp.bfloat16)
        wk = normal(next(keys), (H, H), jnp.bfloat16)
        wv = normal(next(keys), (H, H), jnp.bfloat16)
        lp = {
            "w_qkv": jnp.concatenate([wq, wk, wv], axis=1),          # (H, 3H) bf16
            "b_qkv": jnp.zeros((3 * H,), jnp.float32),
            "wo": normal(next(keys), (H, H), jnp.bfloat16),
            "bo": jnp.zeros((H,), jnp.float32),
            "ln1_g": jnp.ones((H,), jnp.float32), "ln1_b": jnp.zeros((H,), jnp.float32),
            "wi": normal(next(keys), (H, inter), jnp.bfloat16),
            "bi": jnp.zeros((inter,), jnp.float32),
            "wf": normal(next(keys), (inter, H), jnp.bfloat16),
            "bf": jnp.zeros((H,), jnp.float32),
            "ln2_g": jnp.ones((H,), jnp.float32), "ln2_b": jnp.zeros((H,), jnp.float32),
        }
        params["layers"].append(lp)
    return params


# ------------------------------------------------------------------------------- main


if __name__ == "__main__":
    # small config; dH=64 so the 128-lane head-grouped attention path is exercised
    B, S, H, nH, INTER, L = 2, 8, 128, 2, 256, 2
    VOCAB, MAX_POS, TYPE_VOCAB = 100, 64, 2

    root = jax.random.PRNGKey(0)
    k_params, k_ids = jax.random.split(root)
    params = init_params(k_params, VOCAB, MAX_POS, TYPE_VOCAB, H, nH, INTER, L)

    word_ids = jax.random.randint(k_ids, (B, S), 0, VOCAB, dtype=jnp.int32)
    word_segment_ids = jnp.zeros((B, S), dtype=jnp.int32)
    # last two tokens of the second example are padding, to exercise the attention mask
    word_attention_mask = jnp.ones((B, S), dtype=jnp.int32).at[1, S - 2 :].set(0)

    word_seq_out, pooled_out, attn_out = luke_forward(
        params, word_ids, word_segment_ids, word_attention_mask
    )
    jax.block_until_ready((word_seq_out, pooled_out, attn_out))

    assert word_seq_out.shape == (B, S, H)
    assert pooled_out.shape == (B, H)
    assert attn_out.shape == (B, nH, S, S)
    assert bool(jnp.all(jnp.isfinite(word_seq_out)))
    assert bool(jnp.all(jnp.isfinite(pooled_out)))
    assert bool(jnp.all(jnp.isfinite(attn_out)))
    print("KERNEL_OK")
</pallas_src>

<mosaic_0001>
module attributes {stable_mosaic.version = 11 : i64} {
  func.func @kernel(%arg0: i32, %arg1: i32, %arg2: memref<1x8x128xf32, #tpu.memory_space<vmem>>, %arg3: memref<1x128xf32, #tpu.memory_space<vmem>>, %arg4: memref<1x128xf32, #tpu.memory_space<vmem>>, %arg5: memref<1x8x128xbf16, #tpu.memory_space<vmem>>) attributes {dimension_semantics = [#tpu.dimension_semantics<parallel>, #tpu.dimension_semantics<parallel>], iteration_bounds = array<i64: 2, 1>, scalar_prefetch = 0 : i64, scratch_operands = 0 : i64, tpu.core_type = #tpu.core_type<tc>, window_params = [{transform_indices = @transform_0, window_bounds = array<i64: 1, 8, 128>}, {pipeline_mode = #tpu.pipeline_mode<synchronous>, transform_indices = @transform_1, window_bounds = array<i64: 1, 128>}, {pipeline_mode = #tpu.pipeline_mode<synchronous>, transform_indices = @transform_2, window_bounds = array<i64: 1, 128>}, {transform_indices = @transform_3, window_bounds = array<i64: 1, 8, 128>}]} {
    %c0 = arith.constant 0 : index
    %c0_0 = arith.constant 0 : index
    %c0_1 = arith.constant 0 : index
    %0 = vector.load %arg2[%c0, %c0_0, %c0_1] : memref<1x8x128xf32, #tpu.memory_space<vmem>>, vector<1x8x128xf32>
    %1 = vector.shape_cast %0 : vector<1x8x128xf32> to vector<8x128xf32>
    %cst = arith.constant dense<0.000000e+00> : vector<8xf32>
    %2 = vector.multi_reduction <add>, %1, %cst [1] : vector<8x128xf32> to vector<8xf32>
    %3 = vector.shape_cast %2 : vector<8xf32> to vector<8x1xf32>
    %cst_2 = arith.constant 1.280000e+02 : f32
    %4 = vector.broadcast %cst_2 : f32 to vector<8x1xf32>
    %5 = arith.divf %3, %4 : vector<8x1xf32>
    %6 = vector.broadcast %5 : vector<8x1xf32> to vector<8x128xf32>
    %7 = arith.subf %1, %6 : vector<8x128xf32>
    %8 = arith.mulf %7, %7 : vector<8x128xf32>
    %cst_3 = arith.constant dense<0.000000e+00> : vector<8xf32>
    %9 = vector.multi_reduction <add>, %8, %cst_3 [1] : vector<8x128xf32> to vector<8xf32>
    %10 = vector.shape_cast %9 : vector<8xf32> to vector<8x1xf32>
    %cst_4 = arith.constant 1.280000e+02 : f32
    %11 = vector.broadcast %cst_4 : f32 to vector<8x1xf32>
    %12 = arith.divf %10, %11 : vector<8x1xf32>
    %cst_5 = arith.constant 9.99999996E-13 : f32
    %13 = vector.broadcast %cst_5 : f32 to vector<8x1xf32>
    %14 = arith.addf %12, %13 : vector<8x1xf32>
    %15 = math.rsqrt %14 : vector<8x1xf32>
    %16 = vector.broadcast %15 : vector<8x1xf32> to vector<8x128xf32>
    %17 = arith.mulf %7, %16 : vector<8x128xf32>
    %c0_6 = arith.constant 0 : index
    %c0_7 = arith.constant 0 : index
    %18 = vector.load %arg3[%c0_6, %c0_7] : memref<1x128xf32, #tpu.memory_space<vmem>>, vector<1x128xf32>
    %19 = vector.broadcast %18 : vector<1x128xf32> to vector<8x128xf32>
    %20 = arith.mulf %17, %19 : vector<8x128xf32>
    %c0_8 = arith.constant 0 : index
    %c0_9 = arith.constant 0 : index
    %21 = vector.load %arg4[%c0_8, %c0_9] : memref<1x128xf32, #tpu.memory_space<vmem>>, vector<1x128xf32>
    %22 = vector.broadcast %21 : vector<1x128xf32> to vector<8x128xf32>
    %23 = arith.addf %20, %22 : vector<8x128xf32>
    %24 = arith.truncf %23 : vector<8x128xf32> to vector<8x128xbf16>
    %c0_10 = arith.constant 0 : index
    %c0_11 = arith.constant 0 : index
    %c0_12 = arith.constant 0 : index
    %25 = vector.load %arg5[%c0_10, %c0_11, %c0_12] : memref<1x8x128xbf16, #tpu.memory_space<vmem>>, vector<1x8x128xbf16>
    %26 = vector.shape_cast %25 : vector<1x8x128xbf16> to vector<8x128xbf16>
    %27 = vector.shape_cast %24 : vector<8x128xbf16> to vector<1x8x128xbf16>
    tpu.vector_store %arg5[%c0_10, %c0_11, %c0_12], %27 {strides = array<i32>} : memref<1x8x128xbf16, #tpu.memory_space<vmem>>, vector<1x8x128xbf16>,
    return
  }
  func.func @transform_0(%arg0: i32, %arg1: i32) -> (i32, i32, i32) {
    %c0_i32 = arith.constant 0 : i32
    %c0_i32_0 = arith.constant 0 : i32
    return %arg0, %arg1, %c0_i32 : i32, i32, i32
  }
  func.func @transform_1(%arg0: i32, %arg1: i32) -> (i32, i32) {
    %c0_i32 = arith.constant 0 : i32
    %c0_i32_0 = arith.constant 0 : i32
    %c0_i32_1 = arith.constant 0 : i32
    return %c0_i32, %c0_i32_0 : i32, i32
  }
  func.func @transform_2(%arg0: i32, %arg1: i32) -> (i32, i32) {
    %c0_i32 = arith.constant 0 : i32
    %c0_i32_0 = arith.constant 0 : i32
    %c0_i32_1 = arith.constant 0 : i32
    return %c0_i32, %c0_i32_0 : i32, i32
  }
  func.func @transform_3(%arg0: i32, %arg1: i32) -> (i32, i32, i32) {
    %c0_i32 = arith.constant 0 : i32
    %c0_i32_0 = arith.constant 0 : i32
    return %arg0, %arg1, %c0_i32 : i32, i32, i32
  }
}

</mosaic_0001>

<llo_original>
// kernel: tpu_custom_call.1
$region0: #{tpu_custom_call.1}
  #allocation0 [shape = 'u32[]', space=smem, size = 0x4, offset = 0x4, fixed_abs, tag = 'smem constant byte address 0x4 - core index']
  #allocation1 [shape = 'u32[144,128]{1,0:T(1,128)}', space=vmem, size = 0x12000, scoped, tag = 'internal scratch']
  %s0 = inlined_call_operand.hbm [shape: f32[2,8,128], index: 0, kind: input, shape index: {}]
  %s1 = inlined_call_operand.vmem [shape: f32[1,128], index: 1, kind: input, shape index: {}]
  %s2 = inlined_call_operand.vmem [shape: f32[1,128], index: 2, kind: input, shape index: {}]
  %s3 = inlined_call_operand.hbm [shape: bf16[2,8,128], index: 3, kind: output, shape index: {}]
  %s4 = sld [smem:[#allocation0]]
  $region49: #{tpu_custom_call.1} parent=0
    _
  %s6 = ssub.s32 1, %s4
  %s7 = scalar_select 0, %s6, %s4
  $region1: #{tpu_custom_call.1} parent=0
    #allocation2 [shape = 'u8[8192]{0}', space=vmem, size = 0x2000, scoped, tag = 'input window, operand 0']
    #allocation3 [shape = 's32[2]{0}', space=sflag, size = 0x8, scoped, tag = 'scoped memory for tpu_custom_call.1']
    #allocation4 [shape = 's32[2]{0}', space=sflag, size = 0x8, scoped, tag = 'scoped memory for tpu_custom_call.1']
    #allocation5 [shape = 'u8[4096]{0}', space=vmem, size = 0x1000, scoped, tag = 'output window, operand 0']
    %8 = vsyncpa [#allocation3], 0
    %s9 = scalar_lea.sflag [#allocation3], 1
    %10 = vsyncpa %s9, 0
    %11 = vsyncpa [#allocation4], 0
    %s12 = scalar_lea.sflag [#allocation4], 1
    %13 = vsyncpa %s12, 0
    loop: start=0, step=1, limit=4
    $region2: #{tpu_custom_call.1} parent=1 // loop_pre_header
      _
    $region3: #{tpu_custom_call.1} parent=1 // loop_header
      %s15 = sphi 0, %s19
      %p16 = scmp.ge.s32.totalorder %s15, 4
      %s22 = sphi 0, %s34
      %s23 = sphi 0, %s30
      %s24 = sphi 0, %s22
      %s25 = sphi 0, %s23
      %s26 = sphi 0, %s24
      %s27 = sphi 0, %s25
      %s39 = sphi 0, %s41
      %s42 = sphi 0, %s39
      %s43 = sphi 0, %s42
      %s59 = sphi 0, %s43
      %s63 = sphi 0, %s63
      %s65 = sphi 0, %s63
      %s66 = sphi 0, %s65
      %s80 = sphi 0, %s66
      %s84 = sphi 0, %s84
      %s86 = sphi 0, %s84
      %s87 = sphi 0, %s86
      %s101 = sphi 0, %s87
      %s109 = sphi 0, %s111
      %s112 = sphi 0, %s109
      %s113 = sphi 0, %s112
      %s129 = sphi 0, %s113
    $region4: #{tpu_custom_call.1} parent=1 // loop_header_branch
      %18 = sbr.rel (%p16) target = $region8
    $region5: #{tpu_custom_call.1} parent=1 // loop_body
      %s20 = ssub.s32 %s15, 1
      %s21 = ssub.s32 %s15, 2
      %s28 = sadd.s32 1, %s23
      %p29 = scmp.ge.s32.totalorder %s28, 1
      %s30 = scalar_select %p29, 0, %s28
      %s31 = sadd.s32 1, %s22
      %s32 = scalar_select %p29, %s31, %s22
      %p33 = scmp.ge.s32.totalorder %s32, 2
      %s34 = scalar_select %p33, 0, %s32
      %s35 = ssub.s32 %s22, %s34
      %s36 = ssub.s32 %s23, %s30
      %s37 = sor.u32 %s35, %s36
      %p38 = scmp.eq.s32.totalorder %s37, 0
      %s40 = sadd.s32 %s39, 1
      %s41 = scalar_select %p38, %s39, %s40
      %p44 = pneg %p38
      %p45 = scmp.eq.s32.totalorder %s15, 1
      %p46 = por %p44, %p45
      %p47 = scmp.ne.s32.totalorder %s39, %s42
      %p48 = scmp.eq.s32.totalorder %s15, 0
      %p49 = por %p47, %p48
      %p50 = scmp.ne.s32.totalorder %s39, %s42
      %p51 = scmp.eq.s32.totalorder %s20, 1
      %p52 = por %p50, %p51
      %p53 = scmp.ne.s32.totalorder %s42, %s43
      %p54 = scmp.eq.s32.totalorder %s20, 0
      %p55 = por %p53, %p54
      %p56 = scmp.ne.s32.totalorder %s42, %s43
      %p57 = scmp.eq.s32.totalorder %s21, 1
      %p58 = por %p56, %p57
      %p60 = scmp.ne.s32.totalorder %s43, %s59
      %p61 = scmp.eq.s32.totalorder %s21, 0
      %p62 = por %p60, %p61
      %s64 = sadd.s32 %s63, 1
      %p67 = scmp.eq.s32.totalorder %s15, 1
      %p68 = scmp.ne.s32.totalorder %s63, %s65
      %p69 = scmp.eq.s32.totalorder %s15, 0
      %p70 = por %p68, %p69
      %p71 = scmp.ne.s32.totalorder %s63, %s65
      %p72 = scmp.eq.s32.totalorder %s20, 1
      %p73 = por %p71, %p72
      %p74 = scmp.ne.s32.totalorder %s65, %s66
      %p75 = scmp.eq.s32.totalorder %s20, 0
      %p76 = por %p74, %p75
      %p77 = scmp.ne.s32.totalorder %s65, %s66
      %p78 = scmp.eq.s32.totalorder %s21, 1
      %p79 = por %p77, %p78
      %p81 = scmp.ne.s32.totalorder %s66, %s80
      %p82 = scmp.eq.s32.totalorder %s21, 0
      %p83 = por %p81, %p82
      %s85 = sadd.s32 %s84, 1
      %p88 = scmp.eq.s32.totalorder %s15, 1
      %p89 = scmp.ne.s32.totalorder %s84, %s86
      %p90 = scmp.eq.s32.totalorder %s15, 0
      %p91 = por %p89, %p90
      %p92 = scmp.ne.s32.totalorder %s84, %s86
      %p93 = scmp.eq.s32.totalorder %s20, 1
      %p94 = por %p92, %p93
      %p95 = scmp.ne.s32.totalorder %s86, %s87
      %p96 = scmp.eq.s32.totalorder %s20, 0
      %p97 = por %p95, %p96
      %p98 = scmp.ne.s32.totalorder %s86, %s87
      %p99 = scmp.eq.s32.totalorder %s21, 1
      %p100 = por %p98, %p99
      %p102 = scmp.ne.s32.totalorder %s87, %s101
      %p103 = scmp.eq.s32.totalorder %s21, 0
      %p104 = por %p102, %p103
      %s105 = ssub.s32 %s22, %s34
      %s106 = ssub.s32 %s23, %s30
      %s107 = sor.u32 %s105, %s106
      %p108 = scmp.eq.s32.totalorder %s107, 0
      %s110 = sadd.s32 %s109, 1
      %s111 = scalar_select %p108, %s109, %s110
      %p114 = pneg %p108
      %p115 = scmp.eq.s32.totalorder %s15, 1
      %p116 = por %p114, %p115
      %p117 = scmp.ne.s32.totalorder %s109, %s112
      %p118 = scmp.eq.s32.totalorder %s15, 0
      %p119 = por %p117, %p118
      %p120 = scmp.ne.s32.totalorder %s109, %s112
      %p121 = scmp.eq.s32.totalorder %s20, 1
      %p122 = por %p120, %p121
      %p123 = scmp.ne.s32.totalorder %s112, %s113
      %p124 = scmp.eq.s32.totalorder %s20, 0
      %p125 = por %p123, %p124
      %p126 = scmp.ne.s32.totalorder %s112, %s113
      %p127 = scmp.eq.s32.totalorder %s21, 1
      %p128 = por %p126, %p127
      %p130 = scmp.ne.s32.totalorder %s113, %s129
      %p131 = scmp.eq.s32.totalorder %s21, 0
      %p132 = por %p130, %p131
      %p133 = scmp.le.s32.totalorder 1, %s15
      %p134 = scmp.lt.s32.totalorder %s15, 3
      %p135 = pnand %p133, %p134
      %p136 = pneg %p135
      // Predicated region
      $region9: #{tpu_custom_call.1} parent=5 // pred_check
        _
      $region10: #{tpu_custom_call.1} parent=5 // pred_check_branch
        %138 = sbr.rel (%p135) target = $region12
      $region11: #{tpu_custom_call.1} parent=5 // pred_region
        %s139 = ssub.s32 %s15, 1
        // Predicated region
        $region13: #{tpu_custom_call.1} parent=11 // pred_check
          %p140 = pneg %p76
        $region14: #{tpu_custom_call.1} parent=11 // pred_check_branch
          %142 = sbr.rel (%p140) target = $region16
        $region15: #{tpu_custom_call.1} parent=11 // pred_region
          _
        $region16: #{tpu_custom_call.1} parent=11 // pred_fallthru
          _
        // Predicated region
        $region17: #{tpu_custom_call.1} parent=11 // pred_check
          %p143 = pneg %p97
        $region18: #{tpu_custom_call.1} parent=11 // pred_check_branch
          %145 = sbr.rel (%p143) target = $region20
        $region19: #{tpu_custom_call.1} parent=11 // pred_region
          _
        $region20: #{tpu_custom_call.1} parent=11 // pred_fallthru
          _
      $region12: #{tpu_custom_call.1} parent=5 // pred_fallthru
        _
      %p146 = scmp.lt.s32.totalorder %s15, 2
      // Predicated region
      $region21: #{tpu_custom_call.1} parent=5 // pred_check
        %p147 = pneg %p146
      $region22: #{tpu_custom_call.1} parent=5 // pred_check_branch
        %149 = sbr.rel (%p147) target = $region24
      $region23: #{tpu_custom_call.1} parent=5 // pred_region
        // Predicated region
        $region25: #{tpu_custom_call.1} parent=23 // pred_check
          %p150 = pneg %p49
        $region26: #{tpu_custom_call.1} parent=23 // pred_check_branch
          %152 = sbr.rel (%p150) target = $region28
        $region27: #{tpu_custom_call.1} parent=23 // pred_region
          %s153 = sand.u32 %s39, 1
          %s154 = scalar_lea.sflag [#allocation3], %s153
          %s155 = sand.u32 %s39, 1
          %s156 = smul.addr %s155, 8
          %s157 = scalar_lea.vmem [#allocation2], %s156
          %s159 = ssub.s32 128, 128
          %160 = vsyncadd %s154, %s159
          %s161 = sadd.s32 %s23, %s22
          %s162 = smul.addr %s161, 128
          %s163 = scalar_lea.hbm %s0, %s162
          %s165 = sshll.u32 %s157, 4
          %s166 = int_to_ptr.vmem [resolvable:$true] %s165
          %168 = dma.hbm_to_vmem [thread:$0]  %s163, 128, %s166, %s154
        $region28: #{tpu_custom_call.1} parent=23 // pred_fallthru
          _
      $region24: #{tpu_custom_call.1} parent=5 // pred_fallthru
        _
      %p169 = scmp.le.s32.totalorder 1, %s15
      %p170 = scmp.lt.s32.totalorder %s15, 3
      %p171 = pnand %p169, %p170
      %p172 = pneg %p171
      // Predicated region
      $region29: #{tpu_custom_call.1} parent=5 // pred_check
        _
      $region30: #{tpu_custom_call.1} parent=5 // pred_check_branch
        %174 = sbr.rel (%p171) target = $region32
      $region31: #{tpu_custom_call.1} parent=5 // pred_region
        %s175 = ssub.s32 %s15, 1
        %s176 = sand.u32 %s42, 1
        %s177 = scalar_lea.sflag [#allocation3], %s176
        %s178 = sand.u32 %s42, 1
        %s179 = smul.addr %s178, 8
        %s180 = scalar_lea.vmem [#allocation2], %s179
        // Predicated region
        $region33: #{tpu_custom_call.1} parent=31 // pred_check
          %p181 = pneg %p55
        $region34: #{tpu_custom_call.1} parent=31 // pred_check_branch
          %183 = sbr.rel (%p181) target = $region36
        $region35: #{tpu_custom_call.1} parent=31 // pred_region
          %184 = dma.done %s177, 128
        $region36: #{tpu_custom_call.1} parent=31 // pred_fallthru
          _
        %s185 = sand.u32 %s42, 1
        %s186 = scalar_lea.sflag [#allocation3], %s185
        %s187 = sand.u32 %s42, 1
        %s188 = smul.addr %s187, 8
        %s189 = scalar_lea.vmem [#allocation2], %s188
        %p190 = pneg %p55
        %p191 = pneg %p52
        %p192 = pneg %p76
        %p193 = pneg %p73
        %p194 = pneg %p97
        %p195 = pneg %p94
        %p196 = pneg %p125
        %p197 = pneg %p122
        %s198 = sand.u32 %s112, 1
        %s199 = scalar_lea.sflag [#allocation4], %s198
        %s200 = sand.u32 %s112, 1
        %s201 = smul.addr %s200, 4
        %s202 = scalar_lea.vmem [#allocation5], %s201
        %v203 = vld [vmem:[%s180] sm:$0xff]
        %204 = vadd.xlane.f32.xlu0 %v203
        %v205 = vpop.xlane.xlu0 %204
        %v206 = vrcp.pop 128.0
        %v207 = vmul.f32 %v205, %v206
        %v208 = vsub.f32 %v203, %v207
        %v209 = vmul.f32 %v208, %v208
        %210 = vadd.xlane.f32.xlu0 %v209
        %v211 = vpop.xlane.xlu0 %210
        %v212 = vmul.f32 %v211, %v206
        %v213 = vadd.f32 %v212, 1e-12
        %v214 = vrsqrt.pop %v213
        %v215 = vmul.f32 %v208, %v214
        %v216 = vld [vmem:[%s1] sm:$0x1]
        %v218 = vlaneseq
        %v219 = vshrl.u32 %v218, 7
        %v220 = vsub.s32 0, %v219
        %v221 = vrot.slane %v216, %v220
        %v223 = vmul.f32 %v215, %v221
        %v224 = vld [vmem:[%s2] sm:$0x1]
        %v226 = vlaneseq
        %v227 = vshrl.u32 %v226, 7
        %v228 = vsub.s32 0, %v227
        %v229 = vrot.slane %v224, %v228
        %v231 = vadd.f32 %v223, %v229
        %v232 = vpack.c.bf16 %v231, %v231
        %233 = vst [vmem:[%s202] sm:$0xf] %v232
        %s234 = sand.u32 %s112, 1
        %s235 = scalar_lea.sflag [#allocation4], %s234
        %s236 = sand.u32 %s112, 1
        %s237 = smul.addr %s236, 4
        %s238 = scalar_lea.vmem [#allocation5], %s237
        // Predicated region
        $region37: #{tpu_custom_call.1} parent=31 // pred_check
          %p239 = pneg %p122
        $region38: #{tpu_custom_call.1} parent=31 // pred_check_branch
          %241 = sbr.rel (%p239) target = $region40
        $region39: #{tpu_custom_call.1} parent=31 // pred_region
          %s243 = ssub.s32 64, 64
          %244 = vsyncadd %s235, %s243
          %s245 = sadd.s32 %s25, %s24
          %s246 = smul.addr %s245, 64
          %s247 = scalar_lea.hbm %s3, %s246
          %s249 = sshll.u32 %s238, 4
          %s250 = int_to_ptr.vmem [resolvable:$true] %s249
          %252 = dma.vmem_to_hbm [thread:$0]  %s250, 64, %s247, %s235
        $region40: #{tpu_custom_call.1} parent=31 // pred_fallthru
          _
      $region32: #{tpu_custom_call.1} parent=5 // pred_fallthru
        _
      %p253 = scmp.le.s32.totalorder 2, %s15
      // Predicated region
      $region41: #{tpu_custom_call.1} parent=5 // pred_check
        %p254 = pneg %p253
      $region42: #{tpu_custom_call.1} parent=5 // pred_check_branch
        %256 = sbr.rel (%p254) target = $region44
      $region43: #{tpu_custom_call.1} parent=5 // pred_region
        %s257 = ssub.s32 %s15, 2
        // Predicated region
        $region45: #{tpu_custom_call.1} parent=43 // pred_check
          %p258 = pneg %p128
        $region46: #{tpu_custom_call.1} parent=43 // pred_check_branch
          %260 = sbr.rel (%p258) target = $region48
        $region47: #{tpu_custom_call.1} parent=43 // pred_region
          %s261 = sand.u32 %s113, 1
          %s262 = scalar_lea.sflag [#allocation4], %s261
          %s263 = sand.u32 %s113, 1
          %s264 = smul.addr %s263, 4
          %s265 = scalar_lea.vmem [#allocation5], %s264
          %266 = dma.done %s262, 64
        $region48: #{tpu_custom_call.1} parent=43 // pred_fallthru
          _
      $region44: #{tpu_custom_call.1} parent=5 // pred_fallthru
        _
    $region6: #{tpu_custom_call.1} parent=1 // loop_footer
      %s19 = sadd.s32 1, %s15
    $region7: #{tpu_custom_call.1} parent=1 // loop_footer_branch
      %14 = sbr.rel target = $region3
    $region8: #{tpu_custom_call.1} parent=1 // loop_exit
      _
    %267 = vsyncpa [#allocation3], 1
    %s268 = scalar_lea.sflag [#allocation3], 1
    %269 = vsyncpa %s268, 1
    %270 = vsyncpa [#allocation4], 1
    %s271 = scalar_lea.sflag [#allocation4], 1
    %272 = vsyncpa %s271, 1

</llo_original>
